<compile_context>
chip_gen: v5e
topology: v5e:2x2
jax: 0.10.0
libtpu: 0.0.40
codegen_flags: <defaults>
</compile_context>

<pallas_src>
import math

import jax
import jax.numpy as jnp
from jax.experimental import pallas as pl
from jax.experimental.pallas import tpu as pltpu

LANE = 128             # output-feature padding granularity; use 256 on v6e/v7x
                       # if real hidden sizes are >= 256 (2x256^2 MXU)
SINGLE_BLOCK_MAX_B = 1024   # below this, run one un-gridded VMEM-resident block


def _round_up(x, m):
    return ((x + m - 1) // m) * m


def _pick_batch_tile(batch):
    """Large tiles amortize the ~0.35us/grid-step overhead; prefer >= 4 grid
    steps so v7x's 2 TensorCores each get >= 2 steps to pipeline against."""
    for min_steps in (4, 2):
        for tile in (2048, 1024, 512):
            if pl.cdiv(batch, tile) >= min_steps:
                return tile
    return 512


def _make_mlp_kernel(n_layers):
    """Kernel body: (x_ref, w1, b1, ..., wn, bn, o_ref).  Chained MXU dots with
    f32 accumulation; bias + ReLU fused; inter-layer activations cast back to
    the weight dtype (bf16 path feeds the MXU natively)."""
    def kernel(x_ref, *refs):
        o_ref = refs[-1]
        h = x_ref[...]
        for i in range(n_layers):
            w = refs[2 * i][...]
            b = refs[2 * i + 1][...]
            acc = jnp.dot(h.astype(w.dtype), w,
                          preferred_element_type=jnp.float32)
            acc = acc + b.astype(jnp.float32)
            if i < n_layers - 1:            # ReLU between layers only
                h = jnp.maximum(acc, 0.0).astype(w.dtype)
            else:
                h = acc
        o_ref[...] = h.astype(o_ref.dtype)
    return kernel


def init_mlp_params(key, sizes, dtype=jnp.float32):
    """Xavier-uniform weights (same formula as the PyTorch `Xavier` fn), zero
    biases.  Weights are stored [D_in, D_out] (transposed vs. PyTorch)."""
    params = []
    for i in range(len(sizes) - 1):
        fan_in, fan_out = sizes[i], sizes[i + 1]
        std = math.sqrt(2.0 / (fan_in + fan_out))
        a = math.sqrt(3.0) * std
        key, wk = jax.random.split(key)
        w = jax.random.uniform(wk, (fan_in, fan_out), dtype=dtype,
                               minval=-a, maxval=a)
        b = jnp.zeros((fan_out,), dtype=dtype)
        params.append((w, b))
    return params


def pad_params_for_kernel(params, dtype=None, lane=LANE):
    """Zero-pad every OUTPUT feature dim to a multiple of `lane` (zero weight
    columns + zero bias lanes -> padded activation lanes are exact zeros, so
    results are identical after the final lane slice).  Layer 0 keeps its true
    K so the input x needs no padding; later layers' K equals the previous
    padded output width.  Optionally cast to bf16 (MXU-native).  Done once."""
    padded = []
    prev_out_p = None
    for idx, (w, b) in enumerate(params):
        din, dout = w.shape
        din_p = din if idx == 0 else prev_out_p
        dout_p = _round_up(dout, lane)
        wd = w.dtype if dtype is None else dtype
        w_p = jnp.zeros((din_p, dout_p), wd).at[:din, :dout].set(w.astype(wd))
        b_p = jnp.zeros((1, dout_p), wd).at[0, :dout].set(b.astype(wd))
        padded.append((w_p, b_p))
        prev_out_p = dout_p
    return padded


def _nbytes(arrays):
    return sum(int(a.size) * a.dtype.itemsize for a in arrays)


def _vmem_limit_bytes(tile_rows, d_in, d_out_p, max_width_p, act_itemsize, flat):
    """Derived scoped-VMEM budget: resident params + double-buffered x/out
    tiles + widest f32 intermediate, plus headroom for Mosaic scratch and
    (8,128) layout padding.  Capped at 48 MiB so the all-resident design stays
    inside v7x's 64 MiB/core; floor of 16 MiB also covers v5e's low default."""
    tiles = (2 * tile_rows * d_in * act_itemsize
             + 2 * tile_rows * d_out_p * act_itemsize
             + tile_rows * max_width_p * 4)
    need = _nbytes(flat) + tiles + (8 << 20)
    # TODO(synk): stream weights per layer (pltpu.emit_pipeline over layers or
    # an output-feature tile) once resident weights alone approach ~48 MiB.
    return int(min(max(need, 16 << 20), 48 << 20))


def _cost_estimate(batch, padded_params, x, out_bytes, flat):
    flops = 2 * batch * sum(w.shape[0] * w.shape[1] for w, _ in padded_params)
    bytes_accessed = int(x.size) * x.dtype.itemsize + _nbytes(flat) + out_bytes
    return pl.CostEstimate(flops=flops, transcendentals=0,
                           bytes_accessed=bytes_accessed)


def mlp_forward(x, padded_params, d_out, slice_output=True):
    """Entire MLP in one pallas_call.  If the MLP is called repeatedly, pass
    slice_output=False and keep chaining in the lane-padded layout."""
    B, d_in = x.shape
    assert d_in == padded_params[0][0].shape[0]
    n_layers = len(padded_params)
    d_out_p = padded_params[-1][0].shape[1]
    max_width_p = max(w.shape[1] for w, _ in padded_params)

    flat = []
    for w_p, b_p in padded_params:
        flat.extend((w_p, b_p))

    kernel = _make_mlp_kernel(n_layers)
    out_bytes = B * d_out_p * x.dtype.itemsize
    cost = _cost_estimate(B, padded_params, x, out_bytes, flat)
    vmem_res = pl.BlockSpec(memory_space=pltpu.MemorySpace.VMEM)

    if B <= SINGLE_BLOCK_MAX_B:
        # Small batch: one un-gridded block, everything VMEM-resident, no
        # pipeline bookkeeping; x consumed as-is (no host-side padding).
        out_p = pl.pallas_call(
            kernel,
            out_shape=jax.ShapeDtypeStruct((B, d_out_p), x.dtype),
            in_specs=[vmem_res] * (1 + 2 * n_layers),
            out_specs=vmem_res,
            cost_estimate=cost,
            compiler_params=pltpu.CompilerParams(
                vmem_limit_bytes=_vmem_limit_bytes(
                    B, d_in, d_out_p, max_width_p, x.dtype.itemsize, flat)),
        )(x, *flat)
    else:
        # Large batch: tile B with a "parallel" grid axis (shards across
        # TensorCores on multi-TC chips).  Ragged B -> cdiv grid with masked
        # partial blocks; weights/biases are whole-array VMEM residents
        # (single copy, not double-buffered block specs).
        tile = _pick_batch_tile(B)
        in_specs = [pl.BlockSpec((tile, d_in), lambda i: (i, 0))]
        in_specs += [vmem_res] * (2 * n_layers)
        out_p = pl.pallas_call(
            kernel,
            out_shape=jax.ShapeDtypeStruct((B, d_out_p), x.dtype),
            grid=(pl.cdiv(B, tile),),
            in_specs=in_specs,
            out_specs=pl.BlockSpec((tile, d_out_p), lambda i: (i, 0)),
            cost_estimate=cost,
            compiler_params=pltpu.CompilerParams(
                dimension_semantics=("parallel",),
                vmem_limit_bytes=_vmem_limit_bytes(
                    tile, d_in, d_out_p, max_width_p, x.dtype.itemsize, flat)),
        )(x, *flat)

    if slice_output and d_out_p != d_out:
        return out_p[:, :d_out]
    return out_p


def mlp_forward_ref(x, params):
    n_layers = len(params)
    for i, (w, b) in enumerate(params):
        x = x @ w + b
        if i < n_layers - 1:
            x = jnp.maximum(x, 0.0)
    return x


if __name__ == "__main__":
    key = jax.random.PRNGKey(0)
    sizes = [32, 64, 64, 16]     # MLP(sizes) -> Linear/ReLU/Linear/ReLU/Linear
    pkey, xkey, xkey2, xkey3 = jax.random.split(key, 4)
    params = init_mlp_params(pkey, sizes)

    # ---- f32 path (matches the PyTorch module's default dtype) ----
    padded_f32 = pad_params_for_kernel(params)

    # Small batch: single un-gridded VMEM block, no padding anywhere.
    x = jax.random.normal(xkey, (8, sizes[0]), dtype=jnp.float32)
    out = jax.block_until_ready(mlp_forward(x, padded_f32, sizes[-1]))
    ref = mlp_forward_ref(x, params)
    assert out.shape == (8, sizes[-1])
    assert jnp.allclose(out, ref, atol=1e-4, rtol=1e-4)

    # Large batch: batch-tiled "parallel" grid (4 steps of 1024 rows).
    xb = jax.random.normal(xkey2, (4096, sizes[0]), dtype=jnp.float32)
    out_b = jax.block_until_ready(mlp_forward(xb, padded_f32, sizes[-1]))
    ref_b = mlp_forward_ref(xb, params)
    assert out_b.shape == (4096, sizes[-1])
    assert jnp.allclose(out_b, ref_b, atol=1e-4, rtol=1e-4)

    # Ragged batch: grid = cdiv(B, tile) with a masked partial last block
    # (no host-side batch pad / slice around the kernel).
    xr = jax.random.normal(xkey3, (2500, sizes[0]), dtype=jnp.float32)
    out_r = jax.block_until_ready(mlp_forward(xr, padded_f32, sizes[-1]))
    ref_r = mlp_forward_ref(xr, params)
    assert out_r.shape == (2500, sizes[-1])
    assert jnp.allclose(out_r, ref_r, atol=1e-4, rtol=1e-4)

    # ---- bf16 storage path (MXU-native weights/activations, f32 accumulate) ----
    padded_bf16 = pad_params_for_kernel(params, dtype=jnp.bfloat16)
    out_bf = jax.block_until_ready(mlp_forward(xb, padded_bf16, sizes[-1]))
    params_bf_ref = [(w.astype(jnp.bfloat16).astype(jnp.float32),
                      b.astype(jnp.bfloat16).astype(jnp.float32))
                     for w, b in params]
    ref_bf = mlp_forward_ref(xb, params_bf_ref)
    assert out_bf.shape == (4096, sizes[-1])
    assert jnp.allclose(out_bf, ref_bf, atol=1e-1, rtol=5e-2)

    print("KERNEL_OK")
</pallas_src>

<mosaic_0001>
module attributes {stable_mosaic.version = 11 : i64} {
  func.func @kernel(%arg0: memref<8x32xf32, #tpu.memory_space<vmem>>, %arg1: memref<32x128xf32, #tpu.memory_space<vmem>>, %arg2: memref<1x128xf32, #tpu.memory_space<vmem>>, %arg3: memref<128x128xf32, #tpu.memory_space<vmem>>, %arg4: memref<1x128xf32, #tpu.memory_space<vmem>>, %arg5: memref<128x128xf32, #tpu.memory_space<vmem>>, %arg6: memref<1x128xf32, #tpu.memory_space<vmem>>, %arg7: memref<8x128xf32, #tpu.memory_space<vmem>>) attributes {dimension_semantics = [], scalar_prefetch = 0 : i64, scratch_operands = 0 : i64, tpu.core_type = #tpu.core_type<tc>} {
    %c0 = arith.constant 0 : index
    %c0_0 = arith.constant 0 : index
    %0 = vector.load %arg0[%c0, %c0_0] : memref<8x32xf32, #tpu.memory_space<vmem>>, vector<8x32xf32>
    %c0_1 = arith.constant 0 : index
    %c0_2 = arith.constant 0 : index
    %1 = vector.load %arg1[%c0_1, %c0_2] : memref<32x128xf32, #tpu.memory_space<vmem>>, vector<32x128xf32>
    %c0_3 = arith.constant 0 : index
    %c0_4 = arith.constant 0 : index
    %2 = vector.load %arg2[%c0_3, %c0_4] : memref<1x128xf32, #tpu.memory_space<vmem>>, vector<1x128xf32>
    %cst = arith.constant dense<0.000000e+00> : vector<8x128xf32>
    %3 = tpu.matmul %0, %1, %cst {dimension_numbers = #tpu.dot_dimension_numbers<[1], [0], [0], [1], [0, 0, 1, 1], [], []>} : vector<8x32xf32>, vector<32x128xf32>, vector<8x128xf32> -> vector<8x128xf32>
    %4 = vector.broadcast %2 : vector<1x128xf32> to vector<8x128xf32>
    %5 = arith.addf %3, %4 : vector<8x128xf32>
    %cst_5 = arith.constant 0.000000e+00 : f32
    %6 = vector.broadcast %cst_5 : f32 to vector<8x128xf32>
    %7 = arith.maximumf %5, %6 : vector<8x128xf32>
    %c0_6 = arith.constant 0 : index
    %c0_7 = arith.constant 0 : index
    %8 = vector.load %arg3[%c0_6, %c0_7] : memref<128x128xf32, #tpu.memory_space<vmem>>, vector<128x128xf32>
    %c0_8 = arith.constant 0 : index
    %c0_9 = arith.constant 0 : index
    %9 = vector.load %arg4[%c0_8, %c0_9] : memref<1x128xf32, #tpu.memory_space<vmem>>, vector<1x128xf32>
    %cst_10 = arith.constant dense<0.000000e+00> : vector<8x128xf32>
    %10 = tpu.matmul %7, %8, %cst_10 {dimension_numbers = #tpu.dot_dimension_numbers<[1], [0], [0], [1], [0, 0, 1, 1], [], []>} : vector<8x128xf32>, vector<128x128xf32>, vector<8x128xf32> -> vector<8x128xf32>
    %11 = vector.broadcast %9 : vector<1x128xf32> to vector<8x128xf32>
    %12 = arith.addf %10, %11 : vector<8x128xf32>
    %cst_11 = arith.constant 0.000000e+00 : f32
    %13 = vector.broadcast %cst_11 : f32 to vector<8x128xf32>
    %14 = arith.maximumf %12, %13 : vector<8x128xf32>
    %c0_12 = arith.constant 0 : index
    %c0_13 = arith.constant 0 : index
    %15 = vector.load %arg5[%c0_12, %c0_13] : memref<128x128xf32, #tpu.memory_space<vmem>>, vector<128x128xf32>
    %c0_14 = arith.constant 0 : index
    %c0_15 = arith.constant 0 : index
    %16 = vector.load %arg6[%c0_14, %c0_15] : memref<1x128xf32, #tpu.memory_space<vmem>>, vector<1x128xf32>
    %cst_16 = arith.constant dense<0.000000e+00> : vector<8x128xf32>
    %17 = tpu.matmul %14, %15, %cst_16 {dimension_numbers = #tpu.dot_dimension_numbers<[1], [0], [0], [1], [0, 0, 1, 1], [], []>} : vector<8x128xf32>, vector<128x128xf32>, vector<8x128xf32> -> vector<8x128xf32>
    %18 = vector.broadcast %16 : vector<1x128xf32> to vector<8x128xf32>
    %19 = arith.addf %17, %18 : vector<8x128xf32>
    %c0_17 = arith.constant 0 : index
    %c0_18 = arith.constant 0 : index
    %20 = vector.load %arg7[%c0_17, %c0_18] : memref<8x128xf32, #tpu.memory_space<vmem>>, vector<8x128xf32>
    tpu.vector_store %arg7[%c0_17, %c0_18], %19 {strides = array<i32>} : memref<8x128xf32, #tpu.memory_space<vmem>>, vector<8x128xf32>,
    return
  }
}

</mosaic_0001>

<llo_original>
// kernel: tpu_custom_call.1
$region0: #{tpu_custom_call.1}
  #allocation0 [shape = 'u32[]', space=smem, size = 0x4, offset = 0x4, fixed_abs, tag = 'smem constant byte address 0x4 - core index']
  #allocation1 [shape = 'u32[72,128]{1,0:T(1,128)}', space=vmem, size = 0x9000, scoped, tag = 'internal scratch']
  %s0 = inlined_call_operand.hbm [shape: f32[8,32], index: 0, kind: input, shape index: {}]
  %s1 = inlined_call_operand.hbm [shape: f32[32,128], index: 1, kind: input, shape index: {}]
  %s2 = inlined_call_operand.vmem [shape: f32[1,128], index: 2, kind: input, shape index: {}]
  %s3 = inlined_call_operand.hbm [shape: f32[128,128], index: 3, kind: input, shape index: {}]
  %s4 = inlined_call_operand.vmem [shape: f32[1,128], index: 4, kind: input, shape index: {}]
  %s5 = inlined_call_operand.hbm [shape: f32[128,128], index: 5, kind: input, shape index: {}]
  %s6 = inlined_call_operand.vmem [shape: f32[1,128], index: 6, kind: input, shape index: {}]
  %s7 = inlined_call_operand.hbm [shape: f32[8,128], index: 7, kind: output, shape index: {}]
  %s8 = sld [smem:[#allocation0]]
  $region54: #{tpu_custom_call.1} parent=0
    _
  %s10 = ssub.s32 1, %s8
  %s11 = scalar_select 0, %s10, %s8
  $region1: #{tpu_custom_call.1} parent=0
    #allocation2 [shape = 'u8[4096]{0}', space=vmem, size = 0x1000, scoped, tag = 'input window, operand 0, single buffered']
    #allocation3 [shape = 's32[1]{0}', space=sflag, size = 0x4, scoped, tag = 'scoped memory for tpu_custom_call.1']
    #allocation4 [shape = 's32[1]{0}', space=sflag, size = 0x4, scoped, tag = 'scoped memory for tpu_custom_call.1']
    #allocation5 [shape = 'u8[16384]{0}', space=vmem, size = 0x4000, scoped, tag = 'input window, operand 1, single buffered']
    #allocation6 [shape = 's32[1]{0}', space=sflag, size = 0x4, scoped, tag = 'scoped memory for tpu_custom_call.1']
    #allocation7 [shape = 'u8[65536]{0}', space=vmem, size = 0x10000, scoped, tag = 'input window, operand 3, single buffered']
    #allocation8 [shape = 'u8[65536]{0}', space=vmem, size = 0x10000, scoped, tag = 'input window, operand 5, single buffered']
    #allocation9 [shape = 's32[1]{0}', space=sflag, size = 0x4, scoped, tag = 'scoped memory for tpu_custom_call.1']
    #allocation10 [shape = 'u8[4096]{0}', space=vmem, size = 0x1000, scoped, tag = 'output window, operand 0, single buffered']
    %12 = vsyncpa [#allocation3], 0
    %13 = vsyncpa [#allocation6], 0
    %14 = vsyncpa [#allocation9], 0
    %15 = vsyncpa [#allocation4], 0
    // Predicated region
    $region2: #{tpu_custom_call.1} parent=1 // pred_check
      _
    $region3: #{tpu_custom_call.1} parent=1 // pred_check_branch
      %17 = sbr.rel (0) target = $region5
    $region4: #{tpu_custom_call.1} parent=1 // pred_region
      %19 = vsyncadd [#allocation3], 0
      %s21 = sshll.u32 %s0, 4
      %s22 = int_to_ptr.hbm [resolvable:$true] %s21
      %s23 = sshll.u32 [#allocation2], 4
      %s24 = int_to_ptr.vmem [resolvable:$true] %s23
      %26 = dma.hbm_to_vmem [thread:$0]  %s22, 128, %s24, [#allocation3]
    $region5: #{tpu_custom_call.1} parent=1 // pred_fallthru
      _
    // Predicated region
    $region6: #{tpu_custom_call.1} parent=1 // pred_check
      _
    $region7: #{tpu_custom_call.1} parent=1 // pred_check_branch
      %28 = sbr.rel (0) target = $region9
    $region8: #{tpu_custom_call.1} parent=1 // pred_region
      %30 = vsyncadd [#allocation6], 0
      %s31 = sshll.u32 %s1, 4
      %s32 = int_to_ptr.hbm [resolvable:$true] %s31
      %s33 = sshll.u32 [#allocation5], 4
      %s34 = int_to_ptr.vmem [resolvable:$true] %s33
      %39 = dma.hbm_to_vmem [thread:$0]  %s32, 512, %s34, [#allocation6], 128, 128, 8
    $region9: #{tpu_custom_call.1} parent=1 // pred_fallthru
      _
    // Predicated region
    $region10: #{tpu_custom_call.1} parent=1 // pred_check
      _
    $region11: #{tpu_custom_call.1} parent=1 // pred_check_branch
      %41 = sbr.rel (0) target = $region13
    $region12: #{tpu_custom_call.1} parent=1 // pred_region
      _
    $region13: #{tpu_custom_call.1} parent=1 // pred_fallthru
      _
    // Predicated region
    $region14: #{tpu_custom_call.1} parent=1 // pred_check
      _
    $region15: #{tpu_custom_call.1} parent=1 // pred_check_branch
      %43 = sbr.rel (0) target = $region17
    $region16: #{tpu_custom_call.1} parent=1 // pred_region
      %45 = vsyncadd [#allocation6], 0
      %s46 = sshll.u32 %s3, 4
      %s47 = int_to_ptr.hbm [resolvable:$true] %s46
      %s48 = sshll.u32 [#allocation7], 4
      %s49 = int_to_ptr.vmem [resolvable:$true] %s48
      %54 = dma.hbm_to_vmem [thread:$0]  %s47, 2048, %s49, [#allocation6], 128, 128, 8
    $region17: #{tpu_custom_call.1} parent=1 // pred_fallthru
      _
    // Predicated region
    $region18: #{tpu_custom_call.1} parent=1 // pred_check
      _
    $region19: #{tpu_custom_call.1} parent=1 // pred_check_branch
      %56 = sbr.rel (0) target = $region21
    $region20: #{tpu_custom_call.1} parent=1 // pred_region
      _
    $region21: #{tpu_custom_call.1} parent=1 // pred_fallthru
      _
    // Predicated region
    $region22: #{tpu_custom_call.1} parent=1 // pred_check
      _
    $region23: #{tpu_custom_call.1} parent=1 // pred_check_branch
      %58 = sbr.rel (0) target = $region25
    $region24: #{tpu_custom_call.1} parent=1 // pred_region
      %60 = vsyncadd [#allocation9], 0
      %s61 = sshll.u32 %s5, 4
      %s62 = int_to_ptr.hbm [resolvable:$true] %s61
      %s63 = sshll.u32 [#allocation8], 4
      %s64 = int_to_ptr.vmem [resolvable:$true] %s63
      %69 = dma.hbm_to_vmem [thread:$0]  %s62, 2048, %s64, [#allocation9], 128, 128, 8
    $region25: #{tpu_custom_call.1} parent=1 // pred_fallthru
      _
    // Predicated region
    $region26: #{tpu_custom_call.1} parent=1 // pred_check
      _
    $region27: #{tpu_custom_call.1} parent=1 // pred_check_branch
      %71 = sbr.rel (0) target = $region29
    $region28: #{tpu_custom_call.1} parent=1 // pred_region
      _
    $region29: #{tpu_custom_call.1} parent=1 // pred_fallthru
      _
    // Predicated region
    $region30: #{tpu_custom_call.1} parent=1 // pred_check
      _
    $region31: #{tpu_custom_call.1} parent=1 // pred_check_branch
      %73 = sbr.rel (0) target = $region33
    $region32: #{tpu_custom_call.1} parent=1 // pred_region
      %75 = dma.done [#allocation3], 128
    $region33: #{tpu_custom_call.1} parent=1 // pred_fallthru
      _
    // Predicated region
    $region34: #{tpu_custom_call.1} parent=1 // pred_check
      _
    $region35: #{tpu_custom_call.1} parent=1 // pred_check_branch
      %77 = sbr.rel (0) target = $region37
    $region36: #{tpu_custom_call.1} parent=1 // pred_region
      %79 = dma.done [#allocation6], 512
    $region37: #{tpu_custom_call.1} parent=1 // pred_fallthru
      _
    // Predicated region
    $region38: #{tpu_custom_call.1} parent=1 // pred_check
      _
    $region39: #{tpu_custom_call.1} parent=1 // pred_check_branch
      %81 = sbr.rel (0) target = $region41
    $region40: #{tpu_custom_call.1} parent=1 // pred_region
      %83 = dma.done [#allocation6], 2048
    $region41: #{tpu_custom_call.1} parent=1 // pred_fallthru
      _
    // Predicated region
    $region42: #{tpu_custom_call.1} parent=1 // pred_check
      _
    $region43: #{tpu_custom_call.1} parent=1 // pred_check_branch
      %85 = sbr.rel (0) target = $region45
    $region44: #{tpu_custom_call.1} parent=1 // pred_region
      %87 = dma.done [#allocation9], 2048
    $region45: #{tpu_custom_call.1} parent=1 // pred_fallthru
      _
    %v88 = vld [vmem:[#allocation2] sm:$0xff]
    %v89 = vld [vmem:[#allocation5] sm:$0xff]
    %v90 = vld [vmem:[#allocation5 + $0x8] sm:$0xff]
    %v91 = vld [vmem:[#allocation5 + $0x10] sm:$0xff]
    %v92 = vld [vmem:[#allocation5 + $0x18] sm:$0xff]
    %v93 = vld [vmem:[%s2] sm:$0x1]
    %v95 = vperm.slane %v93, 0
    %vm97 = vcmask 261120
    %v99 = vsel %vm97, %v88, 0
    %101 = vmatpush.msra.mxu0 0.0
    %102 = vmatpush.msra.mxu0 0.0
    %103 = vmatpush.msra.mxu0 0.0
    %104 = vmatpush.msra.mxu0 0.0
    %105 = vmatpush.msra.mxu0 0.0
    %106 = vmatpush.msra.mxu0 0.0
    %107 = vmatpush.msra.mxu0 0.0
    %108 = vmatpush.msra.mxu0 0.0
    %109 = vmatpush.msra.mxu0 0.0
    %110 = vmatpush.msra.mxu0 0.0
    %111 = vmatpush.msra.mxu0 0.0
    %112 = vmatpush.msra.mxu0 0.0
    %113 = vmatpush.msra.mxu0 %v92
    %114 = vmatpush.msra.mxu0 %v91
    %115 = vmatpush.msra.mxu0 %v90
    %116 = vmatpush.msra.mxu0 %v89
    %117 = vmatmul.f32.gmra.mxu0 %v99
    %v118 = vpop.f32.mrf.mxu0
    %v119 = vadd.f32 %v95, %v118
    %120 = vdwg.mxu0
    %v121 = vmax.f32 %v119, 0.0
    %v122 = vld [vmem:[#allocation7] sm:$0xff]
    %v123 = vld [vmem:[#allocation7 + $0x8] sm:$0xff]
    %v124 = vld [vmem:[#allocation7 + $0x10] sm:$0xff]
    %v125 = vld [vmem:[#allocation7 + $0x18] sm:$0xff]
    %v126 = vld [vmem:[#allocation7 + $0x20] sm:$0xff]
    %v127 = vld [vmem:[#allocation7 + $0x28] sm:$0xff]
    %v128 = vld [vmem:[#allocation7 + $0x30] sm:$0xff]
    %v129 = vld [vmem:[#allocation7 + $0x38] sm:$0xff]
    %v130 = vld [vmem:[#allocation7 + $0x40] sm:$0xff]
    %v131 = vld [vmem:[#allocation7 + $0x48] sm:$0xff]
    %v132 = vld [vmem:[#allocation7 + $0x50] sm:$0xff]
    %v133 = vld [vmem:[#allocation7 + $0x58] sm:$0xff]
    %v134 = vld [vmem:[#allocation7 + $0x60] sm:$0xff]
    %v135 = vld [vmem:[#allocation7 + $0x68] sm:$0xff]
    %v136 = vld [vmem:[#allocation7 + $0x70] sm:$0xff]
    %v137 = vld [vmem:[#allocation7 + $0x78] sm:$0xff]
    %v138 = vld [vmem:[%s4] sm:$0x1]
    %v140 = vperm.slane %v138, 0
    %142 = vmatpush.msra.mxu0 %v137
    %143 = vmatpush.msra.mxu0 %v136
    %144 = vmatpush.msra.mxu0 %v135
    %145 = vmatpush.msra.mxu0 %v134
    %146 = vmatpush.msra.mxu0 %v133
    %147 = vmatpush.msra.mxu0 %v132
    %148 = vmatpush.msra.mxu0 %v131
    %149 = vmatpush.msra.mxu0 %v130
    %150 = vmatpush.msra.mxu0 %v129
    %151 = vmatpush.msra.mxu0 %v128
    %152 = vmatpush.msra.mxu0 %v127
    %153 = vmatpush.msra.mxu0 %v126
    %154 = vmatpush.msra.mxu0 %v125
    %155 = vmatpush.msra.mxu0 %v124
    %156 = vmatpush.msra.mxu0 %v123
    %157 = vmatpush.msra.mxu0 %v122
    %158 = vmatmul.f32.gmra.mxu0 %v121
    %v159 = vpop.f32.mrf.mxu0
    %v160 = vadd.f32 %v140, %v159
    %161 = vdwg.mxu0
    %v162 = vmax.f32 %v160, 0.0
    %v163 = vld [vmem:[#allocation8] sm:$0xff]
    %v164 = vld [vmem:[#allocation8 + $0x8] sm:$0xff]
    %v165 = vld [vmem:[#allocation8 + $0x10] sm:$0xff]
    %v166 = vld [vmem:[#allocation8 + $0x18] sm:$0xff]
    %v167 = vld [vmem:[#allocation8 + $0x20] sm:$0xff]
    %v168 = vld [vmem:[#allocation8 + $0x28] sm:$0xff]
    %v169 = vld [vmem:[#allocation8 + $0x30] sm:$0xff]
    %v170 = vld [vmem:[#allocation8 + $0x38] sm:$0xff]
    %v171 = vld [vmem:[#allocation8 + $0x40] sm:$0xff]
    %v172 = vld [vmem:[#allocation8 + $0x48] sm:$0xff]
    %v173 = vld [vmem:[#allocation8 + $0x50] sm:$0xff]
    %v174 = vld [vmem:[#allocation8 + $0x58] sm:$0xff]
    %v175 = vld [vmem:[#allocation8 + $0x60] sm:$0xff]
    %v176 = vld [vmem:[#allocation8 + $0x68] sm:$0xff]
    %v177 = vld [vmem:[#allocation8 + $0x70] sm:$0xff]
    %v178 = vld [vmem:[#allocation8 + $0x78] sm:$0xff]
    %v179 = vld [vmem:[%s6] sm:$0x1]
    %v181 = vperm.slane %v179, 0
    %183 = vmatpush.msra.mxu0 %v178
    %184 = vmatpush.msra.mxu0 %v177
    %185 = vmatpush.msra.mxu0 %v176
    %186 = vmatpush.msra.mxu0 %v175
    %187 = vmatpush.msra.mxu0 %v174
    %188 = vmatpush.msra.mxu0 %v173
    %189 = vmatpush.msra.mxu0 %v172
    %190 = vmatpush.msra.mxu0 %v171
    %191 = vmatpush.msra.mxu0 %v170
    %192 = vmatpush.msra.mxu0 %v169
    %193 = vmatpush.msra.mxu0 %v168
    %194 = vmatpush.msra.mxu0 %v167
    %195 = vmatpush.msra.mxu0 %v166
    %196 = vmatpush.msra.mxu0 %v165
    %197 = vmatpush.msra.mxu0 %v164
    %198 = vmatpush.msra.mxu0 %v163
    %199 = vmatmul.f32.gmra.mxu0 %v162
    %v200 = vpop.f32.mrf.mxu0
    %v201 = vadd.f32 %v181, %v200
    %202 = vdwg.mxu0
    %203 = vst [vmem:[#allocation10] sm:$0xff] %v201
    // Predicated region
    $region46: #{tpu_custom_call.1} parent=1 // pred_check
      _
    $region47: #{tpu_custom_call.1} parent=1 // pred_check_branch
      %205 = sbr.rel (0) target = $region49
    $region48: #{tpu_custom_call.1} parent=1 // pred_region
      %207 = vsyncadd [#allocation4], 0
      %s209 = sshll.u32 [#allocation10], 4
      %s210 = int_to_ptr.vmem [resolvable:$true] %s209
      %s211 = sshll.u32 %s7, 4
      %s212 = int_to_ptr.hbm [resolvable:$true] %s211
      %214 = dma.vmem_to_hbm [thread:$0]  %s210, 128, %s212, [#allocation4]
    $region49: #{tpu_custom_call.1} parent=1 // pred_fallthru
      _
    // Predicated region
    $region50: #{tpu_custom_call.1} parent=1 // pred_check
      _
    $region51: #{tpu_custom_call.1} parent=1 // pred_check_branch
      %216 = sbr.rel (0) target = $region53
    $region52: #{tpu_custom_call.1} parent=1 // pred_region
      %218 = dma.done [#allocation4], 128
    $region53: #{tpu_custom_call.1} parent=1 // pred_fallthru
      _
    %219 = vsyncpa [#allocation3], 1
    %220 = vsyncpa [#allocation6], 1
    %221 = vsyncpa [#allocation9], 1
    %222 = vsyncpa [#allocation4], 1

</llo_original>
